<compile_context>
chip_gen: v6e
topology: v6e:2x2x1
jax: 0.10.0
libtpu: 0.0.40
codegen_flags: <defaults>
</compile_context>

<pallas_src>
import math

import jax
import jax.numpy as jnp
from jax.experimental import pallas as pl
from jax.experimental.pallas import tpu as pltpu


def _round_up(x, m):
    return (x + m - 1) // m * m


def make_encoder_kernel(num_layers, g, k0):
    """g  = per-gate lane width (round_up(H, 128))
       k0 = lane-padded embedding width (round_up(E, 128))"""

    def kernel(src_ref, emb_ref, w_ref, b_ref, out_ref):
        del src_ref  # token id is consumed by the embedding index_map (row-gather DMA)
        x = emb_ref[0]                                  # (1, K0) gathered, zero-padded row
        for l in range(num_layers):
            k = k0 if l == 0 else g                     # contraction width for this layer
            w = w_ref[l, :k, :]                         # (k, 3G): static, sublane-aligned
            b = b_ref[l]                                # (1, 4G)
            # ONE lane-dense MXU push for all three gates (r, z, n).  Gate order and
            # 128-lane alignment make every slice below a whole-vreg select.
            gates = jnp.dot(x, w, preferred_element_type=jnp.float32) + b[:, :3 * g]
            r = jax.nn.sigmoid(gates[:, 0 * g:1 * g])
            z = jax.nn.sigmoid(gates[:, 1 * g:2 * g])
            # h0 == 0  =>  W_hn @ h == 0; only b_hn survives inside the reset gate.
            n = jnp.tanh(gates[:, 2 * g:3 * g] + r * b[:, 3 * g:4 * g])
            h = (1.0 - z) * n                           # '+ z*h0' dropped (h0 == 0)
            # Padded lanes of h are exactly 0, so h feeds the next layer directly.
            out_ref[:, l * g:(l + 1) * g] = h           # unmasked 128-lane store
            x = h

    return kernel


def pack_params(table, layer_params, hidden_dim):
    """Repack per-gate params into lane-aligned stacks (each gate owns a 128-lane tile)."""
    H = hidden_dim
    vocab, E = table.shape
    G = _round_up(H, 128)                     # per-gate lane tile
    K0 = _round_up(E, 128)                    # padded embedding / layer-0 contraction dim
    K_max = max(K0, G)                        # uniform K dim of the stacked weights

    table_p = jnp.pad(table, ((0, 0), (0, K0 - E))).reshape(vocab, 1, K0)

    w_list, b_list = [], []
    for (w_ih, w_hh, b_ih, b_hh) in layer_params:
        in_dim = w_ih.shape[1]                # E for layer 0, H otherwise
        # Gate columns padded H->G, rows padded in_dim->K_max (zeros keep math exact).
        gate_blocks = [jnp.pad(w_ih[gt], ((0, K_max - in_dim), (0, G - H)))
                       for gt in range(3)]
        w_list.append(jnp.concatenate(gate_blocks, axis=1))            # (K_max, 3G)
        # Bias segments, each padded to its own G-lane tile:
        #   [ b_ir+b_hr | b_iz+b_hz | b_in | b_hn ]
        segs = [b_ih[0] + b_hh[0], b_ih[1] + b_hh[1], b_ih[2], b_hh[2]]
        b_list.append(jnp.concatenate(
            [jnp.pad(s, ((0, 0), (0, G - H))) for s in segs], axis=1))  # (1, 4G)
        del w_hh  # recurrent weights never reach the kernel (h0 == 0)

    return table_p, jnp.stack(w_list), jnp.stack(b_list), K0, K_max, G


def encoder_forward(src, table, layer_params, *, hidden_dim):
    L = len(layer_params)
    H = hidden_dim
    table_p, w_stack, b_stack, K0, K_max, G = pack_params(table, layer_params, H)

    in_specs = [
        # Data-dependent row gather: the scalar-prefetched token id (SMEM) picks the
        # block index, so exactly one embedding row is DMA'd per call.
        pl.BlockSpec((1, 1, K0), lambda i, s: (s[0], 0, 0)),
        # Whole weight/bias stacks resident (grid-invariant).  See scaling note above
        # for large H*L on v7x (Buffered(1) / layer-axis tiling).
        pl.BlockSpec((L, K_max, 3 * G), lambda i, s: (0, 0, 0)),
        pl.BlockSpec((L, 1, 4 * G), lambda i, s: (0, 0, 0)),
    ]
    out_shape = jax.ShapeDtypeStruct((1, L * G), jnp.float32)     # lane-dense slab
    out_specs = pl.BlockSpec((1, L * G), lambda i, s: (0, 0))

    flops = int(2 * (K0 * 3 * G + (L - 1) * G * 3 * G) + 6 * L * G)
    bytes_accessed = int(4 * (K0 + w_stack.size + b_stack.size + L * G))
    cost = pl.CostEstimate(flops=flops, transcendentals=int(3 * L * G),
                           bytes_accessed=bytes_accessed)

    grid_spec = pltpu.PrefetchScalarGridSpec(
        num_scalar_prefetch=1,          # token id -> SMEM, feeds every index_map
        grid=(1,),                      # single time-step (module semantics)
        in_specs=in_specs,
        out_specs=out_specs,
    )
    fn = pl.pallas_call(
        make_encoder_kernel(L, G, K0),
        out_shape=out_shape,
        grid_spec=grid_spec,
        compiler_params=pltpu.CompilerParams(dimension_semantics=("arbitrary",)),
        cost_estimate=cost,
    )
    slab = fn(src, table_p, w_stack, b_stack)

    # Wrapper-side layout plumbing (plain XLA): un-pad lanes, split (outputs, hidden).
    hidden = slab.reshape(L, 1, G)[:, :, :H]          # (L, 1, H)
    outputs = hidden[L - 1].reshape(1, 1, H)          # seq_len == 1: outputs == h_{L-1}
    return outputs, hidden


def init_params(key, input_dim, hidden_dim, embbed_dim, num_layers):
    keys = jax.random.split(key, 1 + 4 * num_layers)
    table = jax.random.normal(keys[0], (input_dim, embbed_dim), jnp.float32)
    k = 1.0 / math.sqrt(hidden_dim)        # PyTorch GRU default uniform bound
    layer_params = []
    for l in range(num_layers):
        in_dim = embbed_dim if l == 0 else hidden_dim
        kw = keys[1 + 4 * l: 1 + 4 * l + 4]
        w_ih = jax.random.uniform(kw[0], (3, in_dim, hidden_dim), jnp.float32, -k, k)
        w_hh = jax.random.uniform(kw[1], (3, hidden_dim, hidden_dim), jnp.float32, -k, k)
        b_ih = jax.random.uniform(kw[2], (3, 1, hidden_dim), jnp.float32, -k, k)
        b_hh = jax.random.uniform(kw[3], (3, 1, hidden_dim), jnp.float32, -k, k)
        layer_params.append((w_ih, w_hh, b_ih, b_hh))
    return table, layer_params


def reference_forward(src, table, layer_params, hidden_dim):
    # Full PyTorch GRU formula (including the recurrent matmuls, which are zero for
    # h0 == 0) — verifies the kernel's algebraic simplifications are exact.
    x = table[src[0]][None, :]
    hids = []
    for (w_ih, w_hh, b_ih, b_hh) in layer_params:
        h = jnp.zeros((1, hidden_dim), jnp.float32)
        r = jax.nn.sigmoid(x @ w_ih[0] + b_ih[0] + h @ w_hh[0] + b_hh[0])
        z = jax.nn.sigmoid(x @ w_ih[1] + b_ih[1] + h @ w_hh[1] + b_hh[1])
        n = jnp.tanh(x @ w_ih[2] + b_ih[2] + r * (h @ w_hh[2] + b_hh[2]))
        h = (1.0 - z) * n + z * h
        hids.append(h)
        x = h
    outputs = x.reshape(1, 1, hidden_dim)
    hidden = jnp.stack(hids).reshape(len(layer_params), 1, hidden_dim)
    return outputs, hidden


if __name__ == "__main__":
    INPUT_DIM, HIDDEN_DIM, EMBBED_DIM, NUM_LAYERS = 16, 32, 32, 2

    key = jax.random.PRNGKey(0)
    pkey, skey = jax.random.split(key)
    table, layer_params = init_params(pkey, INPUT_DIM, HIDDEN_DIM, EMBBED_DIM, NUM_LAYERS)

    # `.view(1, 1, -1)` in the original forward implies a single input token.
    src = jax.random.randint(skey, (1,), 0, INPUT_DIM, dtype=jnp.int32)

    outputs, hidden = encoder_forward(src, table, layer_params, hidden_dim=HIDDEN_DIM)
    jax.block_until_ready((outputs, hidden))

    ref_out, ref_hid = reference_forward(src, table, layer_params, HIDDEN_DIM)
    assert outputs.shape == (1, 1, HIDDEN_DIM)
    assert hidden.shape == (NUM_LAYERS, 1, HIDDEN_DIM)
    assert jnp.allclose(outputs, ref_out, atol=1e-5, rtol=1e-5)
    assert jnp.allclose(hidden, ref_hid, atol=1e-5, rtol=1e-5)

    print("KERNEL_OK")
</pallas_src>

<mosaic_0001>
module attributes {stable_mosaic.version = 11 : i64} {
  func.func @kernel(%arg0: i32, %arg1: memref<1xi32, #tpu.memory_space<smem>>, %arg2: memref<1x1x128xf32, #tpu.memory_space<vmem>>, %arg3: memref<2x128x384xf32, #tpu.memory_space<vmem>>, %arg4: memref<2x1x512xf32, #tpu.memory_space<vmem>>, %arg5: memref<1x256xf32, #tpu.memory_space<vmem>>) attributes {dimension_semantics = [#tpu.dimension_semantics<arbitrary>], iteration_bounds = array<i64: 1>, scalar_prefetch = 1 : i64, scratch_operands = 0 : i64, tpu.core_type = #tpu.core_type<tc>, window_params = [{transform_indices = @transform_0, window_bounds = array<i64: 1, 1, 128>}, {pipeline_mode = #tpu.pipeline_mode<synchronous>, transform_indices = @transform_1, window_bounds = array<i64: 2, 128, 384>}, {pipeline_mode = #tpu.pipeline_mode<synchronous>, transform_indices = @transform_2, window_bounds = array<i64: 2, 1, 512>}, {pipeline_mode = #tpu.pipeline_mode<synchronous>, transform_indices = @transform_3, window_bounds = array<i64: 1, 256>}]} {
    %c0 = arith.constant 0 : index
    %c0_0 = arith.constant 0 : index
    %c0_1 = arith.constant 0 : index
    %0 = vector.load %arg2[%c0, %c0_0, %c0_1] : memref<1x1x128xf32, #tpu.memory_space<vmem>>, vector<1x1x128xf32>
    %1 = vector.shape_cast %0 : vector<1x1x128xf32> to vector<1x128xf32>
    %c0_2 = arith.constant 0 : index
    %c0_3 = arith.constant 0 : index
    %c0_4 = arith.constant 0 : index
    %2 = vector.load %arg3[%c0_2, %c0_3, %c0_4] : memref<2x128x384xf32, #tpu.memory_space<vmem>>, vector<1x128x384xf32>
    %3 = vector.shape_cast %2 : vector<1x128x384xf32> to vector<128x384xf32>
    %c0_5 = arith.constant 0 : index
    %c0_6 = arith.constant 0 : index
    %c0_7 = arith.constant 0 : index
    %4 = vector.load %arg4[%c0_5, %c0_6, %c0_7] : memref<2x1x512xf32, #tpu.memory_space<vmem>>, vector<1x1x512xf32>
    %5 = vector.shape_cast %4 : vector<1x1x512xf32> to vector<1x512xf32>
    %cst = arith.constant dense<0.000000e+00> : vector<1x384xf32>
    %6 = tpu.matmul %1, %3, %cst {dimension_numbers = #tpu.dot_dimension_numbers<[1], [0], [0], [1], [0, 0, 1, 1], [], []>} : vector<1x128xf32>, vector<128x384xf32>, vector<1x384xf32> -> vector<1x384xf32>
    %7 = vector.extract_strided_slice %5 {offsets = [0, 0], sizes = [1, 384], strides = [1, 1]} : vector<1x512xf32> to vector<1x384xf32>
    %8 = arith.addf %6, %7 : vector<1x384xf32>
    %9 = vector.extract_strided_slice %8 {offsets = [0, 0], sizes = [1, 128], strides = [1, 1]} : vector<1x384xf32> to vector<1x128xf32>
    %10 = arith.negf %9 : vector<1x128xf32>
    %11 = math.exp %10 : vector<1x128xf32>
    %cst_8 = arith.constant 1.000000e+00 : f32
    %12 = vector.broadcast %cst_8 : f32 to vector<1x128xf32>
    %13 = arith.addf %12, %11 : vector<1x128xf32>
    %14 = arith.divf %12, %13 : vector<1x128xf32>
    %15 = vector.extract_strided_slice %8 {offsets = [0, 128], sizes = [1, 128], strides = [1, 1]} : vector<1x384xf32> to vector<1x128xf32>
    %16 = arith.negf %15 : vector<1x128xf32>
    %17 = math.exp %16 : vector<1x128xf32>
    %cst_9 = arith.constant 1.000000e+00 : f32
    %18 = vector.broadcast %cst_9 : f32 to vector<1x128xf32>
    %19 = arith.addf %18, %17 : vector<1x128xf32>
    %20 = arith.divf %18, %19 : vector<1x128xf32>
    %21 = vector.extract_strided_slice %8 {offsets = [0, 256], sizes = [1, 128], strides = [1, 1]} : vector<1x384xf32> to vector<1x128xf32>
    %22 = vector.extract_strided_slice %5 {offsets = [0, 384], sizes = [1, 128], strides = [1, 1]} : vector<1x512xf32> to vector<1x128xf32>
    %23 = arith.mulf %14, %22 : vector<1x128xf32>
    %24 = arith.addf %21, %23 : vector<1x128xf32>
    %25 = math.tanh %24 : vector<1x128xf32>
    %cst_10 = arith.constant 1.000000e+00 : f32
    %26 = vector.broadcast %cst_10 : f32 to vector<1x128xf32>
    %27 = arith.subf %26, %20 : vector<1x128xf32>
    %28 = arith.mulf %27, %25 : vector<1x128xf32>
    %c0_11 = arith.constant 0 : index
    %c0_12 = arith.constant 0 : index
    %29 = vector.load %arg5[%c0_11, %c0_12] : memref<1x256xf32, #tpu.memory_space<vmem>>, vector<1x128xf32>
    tpu.vector_store %arg5[%c0_11, %c0_12], %28 {strides = array<i32>} : memref<1x256xf32, #tpu.memory_space<vmem>>, vector<1x128xf32>,
    %c1 = arith.constant 1 : index
    %c0_13 = arith.constant 0 : index
    %c0_14 = arith.constant 0 : index
    %30 = vector.load %arg3[%c1, %c0_13, %c0_14] : memref<2x128x384xf32, #tpu.memory_space<vmem>>, vector<1x128x384xf32>
    %31 = vector.shape_cast %30 : vector<1x128x384xf32> to vector<128x384xf32>
    %c1_15 = arith.constant 1 : index
    %c0_16 = arith.constant 0 : index
    %c0_17 = arith.constant 0 : index
    %32 = vector.load %arg4[%c1_15, %c0_16, %c0_17] : memref<2x1x512xf32, #tpu.memory_space<vmem>>, vector<1x1x512xf32>
    %33 = vector.shape_cast %32 : vector<1x1x512xf32> to vector<1x512xf32>
    %cst_18 = arith.constant dense<0.000000e+00> : vector<1x384xf32>
    %34 = tpu.matmul %28, %31, %cst_18 {dimension_numbers = #tpu.dot_dimension_numbers<[1], [0], [0], [1], [0, 0, 1, 1], [], []>} : vector<1x128xf32>, vector<128x384xf32>, vector<1x384xf32> -> vector<1x384xf32>
    %35 = vector.extract_strided_slice %33 {offsets = [0, 0], sizes = [1, 384], strides = [1, 1]} : vector<1x512xf32> to vector<1x384xf32>
    %36 = arith.addf %34, %35 : vector<1x384xf32>
    %37 = vector.extract_strided_slice %36 {offsets = [0, 0], sizes = [1, 128], strides = [1, 1]} : vector<1x384xf32> to vector<1x128xf32>
    %38 = arith.negf %37 : vector<1x128xf32>
    %39 = math.exp %38 : vector<1x128xf32>
    %cst_19 = arith.constant 1.000000e+00 : f32
    %40 = vector.broadcast %cst_19 : f32 to vector<1x128xf32>
    %41 = arith.addf %40, %39 : vector<1x128xf32>
    %42 = arith.divf %40, %41 : vector<1x128xf32>
    %43 = vector.extract_strided_slice %36 {offsets = [0, 128], sizes = [1, 128], strides = [1, 1]} : vector<1x384xf32> to vector<1x128xf32>
    %44 = arith.negf %43 : vector<1x128xf32>
    %45 = math.exp %44 : vector<1x128xf32>
    %cst_20 = arith.constant 1.000000e+00 : f32
    %46 = vector.broadcast %cst_20 : f32 to vector<1x128xf32>
    %47 = arith.addf %46, %45 : vector<1x128xf32>
    %48 = arith.divf %46, %47 : vector<1x128xf32>
    %49 = vector.extract_strided_slice %36 {offsets = [0, 256], sizes = [1, 128], strides = [1, 1]} : vector<1x384xf32> to vector<1x128xf32>
    %50 = vector.extract_strided_slice %33 {offsets = [0, 384], sizes = [1, 128], strides = [1, 1]} : vector<1x512xf32> to vector<1x128xf32>
    %51 = arith.mulf %42, %50 : vector<1x128xf32>
    %52 = arith.addf %49, %51 : vector<1x128xf32>
    %53 = math.tanh %52 : vector<1x128xf32>
    %cst_21 = arith.constant 1.000000e+00 : f32
    %54 = vector.broadcast %cst_21 : f32 to vector<1x128xf32>
    %55 = arith.subf %54, %48 : vector<1x128xf32>
    %56 = arith.mulf %55, %53 : vector<1x128xf32>
    %c0_22 = arith.constant 0 : index
    %c128 = arith.constant 128 : index
    %57 = vector.load %arg5[%c0_22, %c128] : memref<1x256xf32, #tpu.memory_space<vmem>>, vector<1x128xf32>
    tpu.vector_store %arg5[%c0_22, %c128], %56 {strides = array<i32>} : memref<1x256xf32, #tpu.memory_space<vmem>>, vector<1x128xf32>,
    return
  }
  func.func @transform_0(%arg0: i32, %arg1: memref<1xi32, #tpu.memory_space<smem>>) -> (i32, i32, i32) {
    %c0 = arith.constant 0 : index
    %0 = memref.load %arg1[%c0] : memref<1xi32, #tpu.memory_space<smem>>
    %c0_i32 = arith.constant 0 : i32
    %c0_i32_0 = arith.constant 0 : i32
    %c0_i32_1 = arith.constant 0 : i32
    return %0, %c0_i32, %c0_i32_0 : i32, i32, i32
  }
  func.func @transform_1(%arg0: i32, %arg1: memref<1xi32, #tpu.memory_space<smem>>) -> (i32, i32, i32) {
    %c0_i32 = arith.constant 0 : i32
    %c0_i32_0 = arith.constant 0 : i32
    %c0_i32_1 = arith.constant 0 : i32
    %c0_i32_2 = arith.constant 0 : i32
    return %c0_i32, %c0_i32_0, %c0_i32_1 : i32, i32, i32
  }
  func.func @transform_2(%arg0: i32, %arg1: memref<1xi32, #tpu.memory_space<smem>>) -> (i32, i32, i32) {
    %c0_i32 = arith.constant 0 : i32
    %c0_i32_0 = arith.constant 0 : i32
    %c0_i32_1 = arith.constant 0 : i32
    %c0_i32_2 = arith.constant 0 : i32
    return %c0_i32, %c0_i32_0, %c0_i32_1 : i32, i32, i32
  }
  func.func @transform_3(%arg0: i32, %arg1: memref<1xi32, #tpu.memory_space<smem>>) -> (i32, i32) {
    %c0_i32 = arith.constant 0 : i32
    %c0_i32_0 = arith.constant 0 : i32
    %c0_i32_1 = arith.constant 0 : i32
    return %c0_i32, %c0_i32_0 : i32, i32
  }
}

</mosaic_0001>

<llo_original>
// kernel: tpu_custom_call.1
$region0: #{tpu_custom_call.1}
  #allocation0 [shape = 'u32[]', space=smem, size = 0x4, offset = 0x4, fixed_abs, tag = 'smem constant byte address 0x4 - core index']
  #allocation1 [shape = 'u32[144,128]{1,0:T(1,128)}', space=vmem, size = 0x12000, scoped, tag = 'internal scratch']
  #allocation2 [shape = 's32[1]{0}', space=sflag, size = 0x4, scoped, tag = 'scoped memory for tpu_custom_call.1']
  #allocation3 [shape = 's32[1]{0:T(128)S(6)}', space=smem, size = 0x200, scoped, tag = 'prefetched SMEM operand 0']
  %s0 = inlined_call_operand.<no memory space> [shape: s32[1], index: 0, kind: input, shape index: {}]
  %s1 = inlined_call_operand.hbm [shape: f32[16,1,128], index: 1, kind: input, shape index: {}]
  %s2 = inlined_call_operand.hbm [shape: f32[2,128,384], index: 2, kind: input, shape index: {}]
  %s3 = inlined_call_operand.hbm [shape: f32[2,1,512], index: 3, kind: input, shape index: {}]
  %s4 = inlined_call_operand.hbm [shape: f32[1,256], index: 4, kind: output, shape index: {}]
  %s5 = sld [smem:[#allocation0]]
  $region34: #{tpu_custom_call.1} parent=0
    _
  %s7 = ssub.s32 1, %s5
  %s8 = scalar_select 0, %s7, %s5
  %9 = sst [smem:[#allocation3]] %s0
  $region1: #{tpu_custom_call.1} parent=0
    #allocation4 [shape = 'u8[512]{0}', space=vmem, size = 0x400, scoped, tag = 'input window, operand 1, single buffered']
    #allocation5 [shape = 's32[1]{0}', space=sflag, size = 0x4, scoped, tag = 'scoped memory for tpu_custom_call.1']
    #allocation6 [shape = 's32[1]{0}', space=sflag, size = 0x4, scoped, tag = 'scoped memory for tpu_custom_call.1']
    #allocation7 [shape = 'u8[393216]{0}', space=vmem, size = 0x60000, scoped, tag = 'input window, operand 2, single buffered']
    #allocation8 [shape = 's32[1]{0}', space=sflag, size = 0x4, scoped, tag = 'scoped memory for tpu_custom_call.1']
    #allocation9 [shape = 'u8[4096]{0}', space=vmem, size = 0x1000, scoped, tag = 'input window, operand 3, single buffered']
    #allocation10 [shape = 'u8[1024]{0}', space=vmem, size = 0x400, scoped, tag = 'output window, operand 0, single buffered']
    %10 = vsyncpa [#allocation5], 0
    %11 = vsyncpa [#allocation8], 0
    %12 = vsyncpa [#allocation6], 0
    // Predicated region
    $region2: #{tpu_custom_call.1} parent=1 // pred_check
      _
    $region3: #{tpu_custom_call.1} parent=1 // pred_check_branch
      %14 = sbr.rel (0) target = $region5
    $region4: #{tpu_custom_call.1} parent=1 // pred_region
      %s15 = sld [smem:[#allocation3]]
      %s17 = ssub.s32 16, 16
      %18 = vsyncadd [#allocation5], %s17
      %s19 = smul.addr %s15, 16
      %s20 = scalar_lea.hbm %s1, %s19
      %s22 = sshll.u32 [#allocation4], 4
      %s23 = int_to_ptr.vmem [resolvable:$true] %s22
      %25 = dma.hbm_to_vmem [thread:$0]  %s20, 16, %s23, [#allocation5]
    $region5: #{tpu_custom_call.1} parent=1 // pred_fallthru
      _
    // Predicated region
    $region6: #{tpu_custom_call.1} parent=1 // pred_check
      _
    $region7: #{tpu_custom_call.1} parent=1 // pred_check_branch
      %27 = sbr.rel (0) target = $region9
    $region8: #{tpu_custom_call.1} parent=1 // pred_region
      %s29 = ssub.s32 12288, 12288
      %30 = vsyncadd [#allocation8], %s29
      %s31 = sshll.u32 [#allocation7], 4
      %s32 = int_to_ptr.vmem [resolvable:$true] %s31
      %37 = dma.hbm_to_vmem [thread:$0]  %s2, 12288, %s32, [#allocation8], 384, 384, 24
    $region9: #{tpu_custom_call.1} parent=1 // pred_fallthru
      _
    // Predicated region
    $region10: #{tpu_custom_call.1} parent=1 // pred_check
      _
    $region11: #{tpu_custom_call.1} parent=1 // pred_check_branch
      %39 = sbr.rel (0) target = $region13
    $region12: #{tpu_custom_call.1} parent=1 // pred_region
      %s41 = ssub.s32 128, 128
      %42 = vsyncadd [#allocation8], %s41
      %s43 = sshll.u32 [#allocation9], 4
      %s44 = int_to_ptr.vmem [resolvable:$true] %s43
      %49 = dma.hbm_to_vmem [thread:$0]  %s3, 128, %s44, [#allocation8], 64, 64, 4
    $region13: #{tpu_custom_call.1} parent=1 // pred_fallthru
      _
    // Predicated region
    $region14: #{tpu_custom_call.1} parent=1 // pred_check
      _
    $region15: #{tpu_custom_call.1} parent=1 // pred_check_branch
      %51 = sbr.rel (0) target = $region17
    $region16: #{tpu_custom_call.1} parent=1 // pred_region
      %52 = dma.done [#allocation5], 16
    $region17: #{tpu_custom_call.1} parent=1 // pred_fallthru
      _
    // Predicated region
    $region18: #{tpu_custom_call.1} parent=1 // pred_check
      _
    $region19: #{tpu_custom_call.1} parent=1 // pred_check_branch
      %54 = sbr.rel (0) target = $region21
    $region20: #{tpu_custom_call.1} parent=1 // pred_region
      %55 = dma.done [#allocation8], 12288
    $region21: #{tpu_custom_call.1} parent=1 // pred_fallthru
      _
    // Predicated region
    $region22: #{tpu_custom_call.1} parent=1 // pred_check
      _
    $region23: #{tpu_custom_call.1} parent=1 // pred_check_branch
      %57 = sbr.rel (0) target = $region25
    $region24: #{tpu_custom_call.1} parent=1 // pred_region
      %58 = dma.done [#allocation8], 128
    $region25: #{tpu_custom_call.1} parent=1 // pred_fallthru
      _
    %s59 = sld [smem:[#allocation3]]
    %v60 = vld [vmem:[#allocation4] sm:$0x1]
    %v61 = vld [vmem:[#allocation7] sm:$0xff]
    %v62 = vld [vmem:[#allocation7 + $0x8] sm:$0xff]
    %v63 = vld [vmem:[#allocation7 + $0x10] sm:$0xff]
    %v64 = vld [vmem:[#allocation7 + $0x18] sm:$0xff]
    %v65 = vld [vmem:[#allocation7 + $0x20] sm:$0xff]
    %v66 = vld [vmem:[#allocation7 + $0x28] sm:$0xff]
    %v67 = vld [vmem:[#allocation7 + $0x30] sm:$0xff]
    %v68 = vld [vmem:[#allocation7 + $0x38] sm:$0xff]
    %v69 = vld [vmem:[#allocation7 + $0x40] sm:$0xff]
    %v70 = vld [vmem:[#allocation7 + $0x48] sm:$0xff]
    %v71 = vld [vmem:[#allocation7 + $0x50] sm:$0xff]
    %v72 = vld [vmem:[#allocation7 + $0x58] sm:$0xff]
    %v73 = vld [vmem:[#allocation7 + $0x60] sm:$0xff]
    %v74 = vld [vmem:[#allocation7 + $0x68] sm:$0xff]
    %v75 = vld [vmem:[#allocation7 + $0x70] sm:$0xff]
    %v76 = vld [vmem:[#allocation7 + $0x78] sm:$0xff]
    %v77 = vld [vmem:[#allocation7 + $0x80] sm:$0xff]
    %v78 = vld [vmem:[#allocation7 + $0x88] sm:$0xff]
    %v79 = vld [vmem:[#allocation7 + $0x90] sm:$0xff]
    %v80 = vld [vmem:[#allocation7 + $0x98] sm:$0xff]
    %v81 = vld [vmem:[#allocation7 + $0xa0] sm:$0xff]
    %v82 = vld [vmem:[#allocation7 + $0xa8] sm:$0xff]
    %v83 = vld [vmem:[#allocation7 + $0xb0] sm:$0xff]
    %v84 = vld [vmem:[#allocation7 + $0xb8] sm:$0xff]
    %v85 = vld [vmem:[#allocation7 + $0xc0] sm:$0xff]
    %v86 = vld [vmem:[#allocation7 + $0xc8] sm:$0xff]
    %v87 = vld [vmem:[#allocation7 + $0xd0] sm:$0xff]
    %v88 = vld [vmem:[#allocation7 + $0xd8] sm:$0xff]
    %v89 = vld [vmem:[#allocation7 + $0xe0] sm:$0xff]
    %v90 = vld [vmem:[#allocation7 + $0xe8] sm:$0xff]
    %v91 = vld [vmem:[#allocation7 + $0xf0] sm:$0xff]
    %v92 = vld [vmem:[#allocation7 + $0xf8] sm:$0xff]
    %v93 = vld [vmem:[#allocation7 + $0x100] sm:$0xff]
    %v94 = vld [vmem:[#allocation7 + $0x108] sm:$0xff]
    %v95 = vld [vmem:[#allocation7 + $0x110] sm:$0xff]
    %v96 = vld [vmem:[#allocation7 + $0x118] sm:$0xff]
    %v97 = vld [vmem:[#allocation7 + $0x120] sm:$0xff]
    %v98 = vld [vmem:[#allocation7 + $0x128] sm:$0xff]
    %v99 = vld [vmem:[#allocation7 + $0x130] sm:$0xff]
    %v100 = vld [vmem:[#allocation7 + $0x138] sm:$0xff]
    %v101 = vld [vmem:[#allocation7 + $0x140] sm:$0xff]
    %v102 = vld [vmem:[#allocation7 + $0x148] sm:$0xff]
    %v103 = vld [vmem:[#allocation7 + $0x150] sm:$0xff]
    %v104 = vld [vmem:[#allocation7 + $0x158] sm:$0xff]
    %v105 = vld [vmem:[#allocation7 + $0x160] sm:$0xff]
    %v106 = vld [vmem:[#allocation7 + $0x168] sm:$0xff]
    %v107 = vld [vmem:[#allocation7 + $0x170] sm:$0xff]
    %v108 = vld [vmem:[#allocation7 + $0x178] sm:$0xff]
    %v109 = vld [vmem:[#allocation9] sm:$0xf]
    %v111 = vlaneseq
    %v112 = vshrl.u32 %v111, 7
    %v113 = vsub.s32 0, %v112
    %v114 = vrot.slane %v109, %v113
    %v115 = vlaneseq
    %v116 = vshrl.u32 %v115, 7
    %v117 = vsub.s32 1, %v116
    %v118 = vrot.slane %v109, %v117
    %v119 = vlaneseq
    %v120 = vshrl.u32 %v119, 7
    %v121 = vsub.s32 2, %v120
    %v122 = vrot.slane %v109, %v121
    %126 = vmatprep.subr.mxu0 %v107
    %127 = vmatpush1.msra.mxu0 %v106
    %128 = vmatprep.subr.mxu0 %v104
    %129 = vmatpush1.msra.mxu0 %v103
    %130 = vmatprep.subr.mxu0 %v101
    %131 = vmatpush1.msra.mxu0 %v100
    %132 = vmatprep.subr.mxu0 %v98
    %133 = vmatpush1.msra.mxu0 %v97
    %134 = vmatprep.subr.mxu0 %v95
    %135 = vmatpush1.msra.mxu0 %v94
    %136 = vmatprep.subr.mxu0 %v92
    %137 = vmatpush1.msra.mxu0 %v91
    %138 = vmatprep.subr.mxu0 %v89
    %139 = vmatpush1.msra.mxu0 %v88
    %140 = vmatprep.subr.mxu0 %v86
    %141 = vmatpush1.msra.mxu0 %v85
    %142 = vmatprep.subr.mxu0 %v83
    %143 = vmatpush1.msra.mxu0 %v82
    %144 = vmatprep.subr.mxu0 %v80
    %145 = vmatpush1.msra.mxu0 %v79
    %146 = vmatprep.subr.mxu0 %v77
    %147 = vmatpush1.msra.mxu0 %v76
    %148 = vmatprep.subr.mxu0 %v74
    %149 = vmatpush1.msra.mxu0 %v73
    %150 = vmatprep.subr.mxu0 %v71
    %151 = vmatpush1.msra.mxu0 %v70
    %152 = vmatprep.subr.mxu0 %v68
    %153 = vmatpush1.msra.mxu0 %v67
    %154 = vmatprep.subr.mxu0 %v65
    %155 = vmatpush1.msra.mxu0 %v64
    %156 = vmatprep.subr.mxu0 %v62
    %157 = vmatpush1.msra.mxu0 %v61
    %158 = vmatprep.subr.mxu0 0.0
    %159 = vmatpush2.msra.mxu0 0.0
    %160 = vmatprep.subr.mxu0 0.0
    %161 = vmatpush2.msra.mxu0 0.0
    %162 = vmatprep.subr.mxu0 0.0
    %163 = vmatpush2.msra.mxu0 0.0
    %164 = vmatprep.subr.mxu0 0.0
    %165 = vmatpush2.msra.mxu0 0.0
    %166 = vmatprep.subr.mxu0 0.0
    %167 = vmatpush2.msra.mxu0 0.0
    %168 = vmatprep.subr.mxu0 0.0
    %169 = vmatpush2.msra.mxu0 0.0
    %170 = vmatprep.subr.mxu0 0.0
    %171 = vmatpush2.msra.mxu0 0.0
    %172 = vmatprep.subr.mxu0 0.0
    %173 = vmatpush2.msra.mxu0 0.0
    %174 = vmatprep.subr.mxu0 0.0
    %175 = vmatpush2.msra.mxu0 0.0
    %176 = vmatprep.subr.mxu0 0.0
    %177 = vmatpush2.msra.mxu0 0.0
    %178 = vmatprep.subr.mxu0 0.0
    %179 = vmatpush2.msra.mxu0 0.0
    %180 = vmatprep.subr.mxu0 0.0
    %181 = vmatpush2.msra.mxu0 0.0
    %182 = vmatprep.subr.mxu0 0.0
    %183 = vmatpush2.msra.mxu0 0.0
    %184 = vmatprep.subr.mxu0 0.0
    %185 = vmatpush2.msra.mxu0 0.0
    %186 = vmatprep.subr.mxu0 0.0
    %187 = vmatpush2.msra.mxu0 0.0
    %188 = vmatprep.subr.mxu0 0.0
    %189 = vmatpush2.msra.mxu0 0.0
    %190 = vmatprep.mubr.f32.mxu0 0.0
    %191 = vmatmul.mubr.f32.gmra.mxu0 %v60
    %v192 = vpop.f32.mrf.mxu0
    %v193 = vadd.f32 %v114, %v192
    %v194 = vpop.f32.mrf.mxu0
    %v195 = vadd.f32 %v118, %v194
    %196 = vdwg.mxu0
    %197 = vmatprep.subr.mxu0 0.0
    %198 = vmatpush1.msra.mxu0 %v108
    %199 = vmatprep.subr.mxu0 0.0
    %200 = vmatpush1.msra.mxu0 %v105
    %201 = vmatprep.subr.mxu0 0.0
    %202 = vmatpush1.msra.mxu0 %v102
    %203 = vmatprep.subr.mxu0 0.0
    %204 = vmatpush1.msra.mxu0 %v99
    %205 = vmatprep.subr.mxu0 0.0
    %206 = vmatpush1.msra.mxu0 %v96
    %207 = vmatprep.subr.mxu0 0.0
    %208 = vmatpush1.msra.mxu0 %v93
    %209 = vmatprep.subr.mxu0 0.0
    %210 = vmatpush1.msra.mxu0 %v90
    %211 = vmatprep.subr.mxu0 0.0
    %212 = vmatpush1.msra.mxu0 %v87
    %213 = vmatprep.subr.mxu0 0.0
    %214 = vmatpush1.msra.mxu0 %v84
    %215 = vmatprep.subr.mxu0 0.0
    %216 = vmatpush1.msra.mxu0 %v81
    %217 = vmatprep.subr.mxu0 0.0
    %218 = vmatpush1.msra.mxu0 %v78
    %219 = vmatprep.subr.mxu0 0.0
    %220 = vmatpush1.msra.mxu0 %v75
    %221 = vmatprep.subr.mxu0 0.0
    %222 = vmatpush1.msra.mxu0 %v72
    %223 = vmatprep.subr.mxu0 0.0
    %224 = vmatpush1.msra.mxu0 %v69
    %225 = vmatprep.subr.mxu0 0.0
    %226 = vmatpush1.msra.mxu0 %v66
    %227 = vmatprep.subr.mxu0 0.0
    %228 = vmatpush1.msra.mxu0 %v63
    %229 = vmatprep.subr.mxu0 0.0
    %230 = vmatpush2.msra.mxu0 0.0
    %231 = vmatprep.subr.mxu0 0.0
    %232 = vmatpush2.msra.mxu0 0.0
    %233 = vmatprep.subr.mxu0 0.0
    %234 = vmatpush2.msra.mxu0 0.0
    %235 = vmatprep.subr.mxu0 0.0
    %236 = vmatpush2.msra.mxu0 0.0
    %237 = vmatprep.subr.mxu0 0.0
    %238 = vmatpush2.msra.mxu0 0.0
    %239 = vmatprep.subr.mxu0 0.0
    %240 = vmatpush2.msra.mxu0 0.0
    %241 = vmatprep.subr.mxu0 0.0
    %242 = vmatpush2.msra.mxu0 0.0
    %243 = vmatprep.subr.mxu0 0.0
    %244 = vmatpush2.msra.mxu0 0.0
    %245 = vmatprep.subr.mxu0 0.0
    %246 = vmatpush2.msra.mxu0 0.0
    %247 = vmatprep.subr.mxu0 0.0
    %248 = vmatpush2.msra.mxu0 0.0
    %249 = vmatprep.subr.mxu0 0.0
    %250 = vmatpush2.msra.mxu0 0.0
    %251 = vmatprep.subr.mxu0 0.0
    %252 = vmatpush2.msra.mxu0 0.0
    %253 = vmatprep.subr.mxu0 0.0
    %254 = vmatpush2.msra.mxu0 0.0
    %255 = vmatprep.subr.mxu0 0.0
    %256 = vmatpush2.msra.mxu0 0.0
    %257 = vmatprep.subr.mxu0 0.0
    %258 = vmatpush2.msra.mxu0 0.0
    %259 = vmatprep.subr.mxu0 0.0
    %260 = vmatpush2.msra.mxu0 0.0
    %261 = vmatprep.mubr.f32.mxu0 0.0
    %262 = vmatmul.mubr.f32.gmra.mxu0 %v60
    %v263 = vpop.f32.mrf.mxu0
    %v264 = vadd.f32 %v122, %v263
    %v265 = vpop.f32.mrf.mxu0
    %266 = vdwg.mxu0
    %v267 = vxor.u32 %v193, 2147483648
    %v268 = vmul.f32 %v267, 1.442695
    %v269 = vpow.pop %v268
    %v270 = vadd.f32 %v269, 1.0
    %v271 = vrcp.pop %v270
    %v272 = vmul.f32 1.0, %v271
    %v273 = vxor.u32 %v195, 2147483648
    %v274 = vmul.f32 %v273, 1.442695
    %v275 = vpow.pop %v274
    %v276 = vadd.f32 %v275, 1.0
    %v277 = vrcp.pop %v276
    %v278 = vmul.f32 1.0, %v277
    %v279 = vlaneseq
    %v280 = vshrl.u32 %v279, 7
    %v281 = vsub.s32 3, %v280
    %v282 = vrot.slane %v109, %v281
    %v284 = vmul.f32 %v272, %v282
    %v285 = vadd.f32 %v264, %v284
    %v286 = vtanh.pop %v285
    %v287 = vsub.f32 1.0, %v278
    %v288 = vmul.f32 %v287, %v286
    %v289 = vlaneseq
    %vm290 = vcmp.ge.s32.totalorder %v289, 0
    %vm291 = vcmp.lt.s32.totalorder %v289, 128
    %vm292 = vmand %vm290, %vm291
    %293 = vst.msk [vmem:[#allocation10] sm:$0x1] %vm292, %v288
    %s294 = scalar_lea.vmem [#allocation7], 384
    %v295 = vld [vmem:[%s294] sm:$0xff]
    %v296 = vld [vmem:[%s294 + $0x8] sm:$0xff]
    %v297 = vld [vmem:[%s294 + $0x10] sm:$0xff]
    %v298 = vld [vmem:[%s294 + $0x18] sm:$0xff]
    %v299 = vld [vmem:[%s294 + $0x20] sm:$0xff]
    %v300 = vld [vmem:[%s294 + $0x28] sm:$0xff]
    %v301 = vld [vmem:[%s294 + $0x30] sm:$0xff]
    %v302 = vld [vmem:[%s294 + $0x38] sm:$0xff]
    %v303 = vld [vmem:[%s294 + $0x40] sm:$0xff]
    %v304 = vld [vmem:[%s294 + $0x48] sm:$0xff]
    %v305 = vld [vmem:[%s294 + $0x50] sm:$0xff]
    %v306 = vld [vmem:[%s294 + $0x58] sm:$0xff]
    %v307 = vld [vmem:[%s294 + $0x60] sm:$0xff]
    %v308 = vld [vmem:[%s294 + $0x68] sm:$0xff]
    %v309 = vld [vmem:[%s294 + $0x70] sm:$0xff]
    %v310 = vld [vmem:[%s294 + $0x78] sm:$0xff]
    %v311 = vld [vmem:[%s294 + $0x80] sm:$0xff]
    %v312 = vld [vmem:[%s294 + $0x88] sm:$0xff]
    %v313 = vld [vmem:[%s294 + $0x90] sm:$0xff]
    %v314 = vld [vmem:[%s294 + $0x98] sm:$0xff]
    %v315 = vld [vmem:[%s294 + $0xa0] sm:$0xff]
    %v316 = vld [vmem:[%s294 + $0xa8] sm:$0xff]
    %v317 = vld [vmem:[%s294 + $0xb0] sm:$0xff]
    %v318 = vld [vmem:[%s294 + $0xb8] sm:$0xff]
    %v319 = vld [vmem:[%s294 + $0xc0] sm:$0xff]
    %v320 = vld [vmem:[%s294 + $0xc8] sm:$0xff]
    %v321 = vld [vmem:[%s294 + $0xd0] sm:$0xff]
    %v322 = vld [vmem:[%s294 + $0xd8] sm:$0xff]
    %v323 = vld [vmem:[%s294 + $0xe0] sm:$0xff]
    %v324 = vld [vmem:[%s294 + $0xe8] sm:$0xff]
    %v325 = vld [vmem:[%s294 + $0xf0] sm:$0xff]
    %v326 = vld [vmem:[%s294 + $0xf8] sm:$0xff]
    %v327 = vld [vmem:[%s294 + $0x100] sm:$0xff]
    %v328 = vld [vmem:[%s294 + $0x108] sm:$0xff]
    %v329 = vld [vmem:[%s294 + $0x110] sm:$0xff]
    %v330 = vld [vmem:[%s294 + $0x118] sm:$0xff]
    %v331 = vld [vmem:[%s294 + $0x120] sm:$0xff]
    %v332 = vld [vmem:[%s294 + $0x128] sm:$0xff]
    %v333 = vld [vmem:[%s294 + $0x130] sm:$0xff]
    %v334 = vld [vmem:[%s294 + $0x138] sm:$0xff]
    %v335 = vld [vmem:[%s294 + $0x140] sm:$0xff]
    %v336 = vld [vmem:[%s294 + $0x148] sm:$0xff]
    %v337 = vld [vmem:[%s294 + $0x150] sm:$0xff]
    %v338 = vld [vmem:[%s294 + $0x158] sm:$0xff]
    %v339 = vld [vmem:[%s294 + $0x160] sm:$0xff]
    %v340 = vld [vmem:[%s294 + $0x168] sm:$0xff]
    %v341 = vld [vmem:[%s294 + $0x170] sm:$0xff]
    %v342 = vld [vmem:[%s294 + $0x178] sm:$0xff]
    %s343 = scalar_lea.vmem [#allocation9], 4
    %v344 = vld [vmem:[%s343] sm:$0xf]
    %v346 = vlaneseq
    %v347 = vshrl.u32 %v346, 7
    %v348 = vsub.s32 0, %v347
    %v349 = vrot.slane %v344, %v348
    %v350 = vlaneseq
    %v351 = vshrl.u32 %v350, 7
    %v352 = vsub.s32 1, %v351
    %v353 = vrot.slane %v344, %v352
    %v354 = vlaneseq
    %v355 = vshrl.u32 %v354, 7
    %v356 = vsub.s32 2, %v355
    %v357 = vrot.slane %v344, %v356
    %361 = vmatprep.subr.mxu0 %v341
    %362 = vmatpush1.msra.mxu0 %v340
    %363 = vmatprep.subr.mxu0 %v338
    %364 = vmatpush1.msra.mxu0 %v337
    %365 = vmatprep.subr.mxu0 %v335
    %366 = vmatpush1.msra.mxu0 %v334
    %367 = vmatprep.subr.mxu0 %v332
    %368 = vmatpush1.msra.mxu0 %v331
    %369 = vmatprep.subr.mxu0 %v329
    %370 = vmatpush1.msra.mxu0 %v328
    %371 = vmatprep.subr.mxu0 %v326
    %372 = vmatpush1.msra.mxu0 %v325
    %373 = vmatprep.subr.mxu0 %v323
    %374 = vmatpush1.msra.mxu0 %v322
    %375 = vmatprep.subr.mxu0 %v320
    %376 = vmatpush1.msra.mxu0 %v319
    %377 = vmatprep.subr.mxu0 %v317
    %378 = vmatpush1.msra.mxu0 %v316
    %379 = vmatprep.subr.mxu0 %v314
    %380 = vmatpush1.msra.mxu0 %v313
    %381 = vmatprep.subr.mxu0 %v311
    %382 = vmatpush1.msra.mxu0 %v310
    %383 = vmatprep.subr.mxu0 %v308
    %384 = vmatpush1.msra.mxu0 %v307
    %385 = vmatprep.subr.mxu0 %v305
    %386 = vmatpush1.msra.mxu0 %v304
    %387 = vmatprep.subr.mxu0 %v302
    %388 = vmatpush1.msra.mxu0 %v301
    %389 = vmatprep.subr.mxu0 %v299
    %390 = vmatpush1.msra.mxu0 %v298
    %391 = vmatprep.subr.mxu0 %v296
    %392 = vmatpush1.msra.mxu0 %v295
    %393 = vmatprep.subr.mxu0 0.0
    %394 = vmatpush2.msra.mxu0 0.0
    %395 = vmatprep.subr.mxu0 0.0
    %396 = vmatpush2.msra.mxu0 0.0
    %397 = vmatprep.subr.mxu0 0.0
    %398 = vmatpush2.msra.mxu0 0.0
    %399 = vmatprep.subr.mxu0 0.0
    %400 = vmatpush2.msra.mxu0 0.0
    %401 = vmatprep.subr.mxu0 0.0
    %402 = vmatpush2.msra.mxu0 0.0
    %403 = vmatprep.subr.mxu0 0.0
    %404 = vmatpush2.msra.mxu0 0.0
    %405 = vmatprep.subr.mxu0 0.0
    %406 = vmatpush2.msra.mxu0 0.0
    %407 = vmatprep.subr.mxu0 0.0
    %408 = vmatpush2.msra.mxu0 0.0
    %409 = vmatprep.subr.mxu0 0.0
    %410 = vmatpush2.msra.mxu0 0.0
    %411 = vmatprep.subr.mxu0 0.0
    %412 = vmatpush2.msra.mxu0 0.0
    %413 = vmatprep.subr.mxu0 0.0
    %414 = vmatpush2.msra.mxu0 0.0
    %415 = vmatprep.subr.mxu0 0.0
    %416 = vmatpush2.msra.mxu0 0.0
    %417 = vmatprep.subr.mxu0 0.0
    %418 = vmatpush2.msra.mxu0 0.0
    %419 = vmatprep.subr.mxu0 0.0
    %420 = vmatpush2.msra.mxu0 0.0
    %421 = vmatprep.subr.mxu0 0.0
    %422 = vmatpush2.msra.mxu0 0.0
    %423 = vmatprep.subr.mxu0 0.0
    %424 = vmatpush2.msra.mxu0 0.0
    %425 = vmatprep.mubr.f32.mxu0 0.0
    %426 = vmatmul.mubr.f32.gmra.mxu0 %v288
    %v427 = vpop.f32.mrf.mxu0
    %v428 = vadd.f32 %v349, %v427
    %v429 = vpop.f32.mrf.mxu0
    %v430 = vadd.f32 %v353, %v429
    %431 = vdwg.mxu0
    %432 = vmatprep.subr.mxu0 0.0
    %433 = vmatpush1.msra.mxu0 %v342
    %434 = vmatprep.subr.mxu0 0.0
    %435 = vmatpush1.msra.mxu0 %v339
    %436 = vmatprep.subr.mxu0 0.0
    %437 = vmatpush1.msra.mxu0 %v336
    %438 = vmatprep.subr.mxu0 0.0
    %439 = vmatpush1.msra.mxu0 %v333
    %440 = vmatprep.subr.mxu0 0.0
    %441 = vmatpush1.msra.mxu0 %v330
    %442 = vmatprep.subr.mxu0 0.0
    %443 = vmatpush1.msra.mxu0 %v327
    %444 = vmatprep.subr.mxu0 0.0
    %445 = vmatpush1.msra.mxu0 %v324
    %446 = vmatprep.subr.mxu0 0.0
    %447 = vmatpush1.msra.mxu0 %v321
    %448 = vmatprep.subr.mxu0 0.0
    %449 = vmatpush1.msra.mxu0 %v318
    %450 = vmatprep.subr.mxu0 0.0
    %451 = vmatpush1.msra.mxu0 %v315
    %452 = vmatprep.subr.mxu0 0.0
    %453 = vmatpush1.msra.mxu0 %v312
    %454 = vmatprep.subr.mxu0 0.0
    %455 = vmatpush1.msra.mxu0 %v309
    %456 = vmatprep.subr.mxu0 0.0
    %457 = vmatpush1.msra.mxu0 %v306
    %458 = vmatprep.subr.mxu0 0.0
    %459 = vmatpush1.msra.mxu0 %v303
    %460 = vmatprep.subr.mxu0 0.0
    %461 = vmatpush1.msra.mxu0 %v300
    %462 = vmatprep.subr.mxu0 0.0
    %463 = vmatpush1.msra.mxu0 %v297
    %464 = vmatprep.subr.mxu0 0.0
    %465 = vmatpush2.msra.mxu0 0.0
    %466 = vmatprep.subr.mxu0 0.0
    %467 = vmatpush2.msra.mxu0 0.0
    %468 = vmatprep.subr.mxu0 0.0
    %469 = vmatpush2.msra.mxu0 0.0
    %470 = vmatprep.subr.mxu0 0.0
    %471 = vmatpush2.msra.mxu0 0.0
    %472 = vmatprep.subr.mxu0 0.0
    %473 = vmatpush2.msra.mxu0 0.0
    %474 = vmatprep.subr.mxu0 0.0
    %475 = vmatpush2.msra.mxu0 0.0
    %476 = vmatprep.subr.mxu0 0.0
    %477 = vmatpush2.msra.mxu0 0.0
    %478 = vmatprep.subr.mxu0 0.0
    %479 = vmatpush2.msra.mxu0 0.0
    %480 = vmatprep.subr.mxu0 0.0
    %481 = vmatpush2.msra.mxu0 0.0
    %482 = vmatprep.subr.mxu0 0.0
    %483 = vmatpush2.msra.mxu0 0.0
    %484 = vmatprep.subr.mxu0 0.0
    %485 = vmatpush2.msra.mxu0 0.0
    %486 = vmatprep.subr.mxu0 0.0
    %487 = vmatpush2.msra.mxu0 0.0
    %488 = vmatprep.subr.mxu0 0.0
    %489 = vmatpush2.msra.mxu0 0.0
    %490 = vmatprep.subr.mxu0 0.0
    %491 = vmatpush2.msra.mxu0 0.0
    %492 = vmatprep.subr.mxu0 0.0
    %493 = vmatpush2.msra.mxu0 0.0
    %494 = vmatprep.subr.mxu0 0.0
    %495 = vmatpush2.msra.mxu0 0.0
    %496 = vmatprep.mubr.f32.mxu0 0.0
    %497 = vmatmul.mubr.f32.gmra.mxu0 %v288
    %v498 = vpop.f32.mrf.mxu0
    %v499 = vadd.f32 %v357, %v498
    %v500 = vpop.f32.mrf.mxu0
    %501 = vdwg.mxu0
    %v502 = vxor.u32 %v428, 2147483648
    %v503 = vmul.f32 %v502, 1.442695
    %v504 = vpow.pop %v503
    %v505 = vadd.f32 %v504, 1.0
    %v506 = vrcp.pop %v505
    %v507 = vmul.f32 1.0, %v506
    %v508 = vxor.u32 %v430, 2147483648
    %v509 = vmul.f32 %v508, 1.442695
    %v510 = vpow.pop %v509
    %v511 = vadd.f32 %v510, 1.0
    %v512 = vrcp.pop %v511
    %v513 = vmul.f32 1.0, %v512
    %v514 = vlaneseq
    %v515 = vshrl.u32 %v514, 7
    %v516 = vsub.s32 3, %v515
    %v517 = vrot.slane %v344, %v516
    %v519 = vmul.f32 %v507, %v517
    %v520 = vadd.f32 %v499, %v519
    %v521 = vtanh.pop %v520
    %v522 = vsub.f32 1.0, %v513
    %v523 = vmul.f32 %v522, %v521
    %524 = vst.msk [vmem:[#allocation10 + $0x1] sm:$0x1] %vm292, %v523
    // Predicated region
    $region26: #{tpu_custom_call.1} parent=1 // pred_check
      _
    $region27: #{tpu_custom_call.1} parent=1 // pred_check_branch
      %526 = sbr.rel (0) target = $region29
    $region28: #{tpu_custom_call.1} parent=1 // pred_region
      %s528 = ssub.s32 32, 32
      %529 = vsyncadd [#allocation6], %s528
      %s531 = sshll.u32 [#allocation10], 4
      %s532 = int_to_ptr.vmem [resolvable:$true] %s531
      %534 = dma.vmem_to_hbm [thread:$0]  %s532, 32, %s4, [#allocation6]
    $region29: #{tpu_custom_call.1} parent=1 // pred_fallthru
      _
    // Predicated region
    $region30: #{tpu_custom_call.1} parent=1 // pred_check
      _
    $region31: #{tpu_custom_call.1} parent=1 // pred_check_branch
      %536 = sbr.rel (0) target = $region33
    $region32: #{tpu_custom_call.1} parent=1 // pred_region
      %537 = dma.done [#allocation6], 32
    $region33: #{tpu_custom_call.1} parent=1 // pred_fallthru
      _
    %538 = vsyncpa [#allocation5], 1
    %539 = vsyncpa [#allocation8], 1
    %540 = vsyncpa [#allocation6], 1

</llo_original>
